<compile_context>
chip_gen: v7x
topology: tpu7x:2x2x1
jax: 0.10.0
libtpu: 0.0.40
codegen_flags: <defaults>
</compile_context>

<pallas_src>
import jax
import jax.numpy as jnp
from jax.experimental import pallas as pl
from jax.experimental.pallas import tpu as pltpu


STATE_SIZE = 4      # CartPole-v0 observation dim
ACTION_SIZE = 2     # CartPole-v0 action dim (unused by Critic.forward)
H1, H2, H3 = 32, 64, 32
OUT = 1
LANE = 128          # hidden dims zero-padded to full 128 sublanes (exact)

# Column layout of the packed (128, 8) "aux" array.
COL_W1_0 = 0                      # columns 0..3: w1 (out-major, PyTorch layout)
COL_B1 = STATE_SIZE               # 4
COL_B2 = 5
COL_B3 = 6
COL_W4 = 7


def _round_up(x, m):
    return (x + m - 1) // m * m


def _cdiv(a, b):
    return -(-a // b)


def critic_kernel(x_ref, aux_ref, w2_ref, w3_ref, out_ref):
    """Fused 4-layer MLP on one batch tile.

    x_ref:   (STATE_SIZE, tb) f32  -- batch on lanes
    aux_ref: (128, 8)        f32  -- w1 cols, b1..b3 cols, w4(+b4) col
    w2_ref:  (128, 128)            -- zero-padded Linear(32->64) weight
    w3_ref:  (128, 128)            -- zero-padded Linear(64->32) weight
    out_ref: (1, tb)         f32  -- lane-dense value row
    """
    x = x_ref[...]                                   # (4, tb)
    aux = aux_ref[...]                               # (128, 8)

    # ---- Layer 1: 4 -> 32 on the VPU (outer-product accumulation). --------
    h = aux[:, 0:1] * x[0:1, :]
    for k in range(1, STATE_SIZE):
        h = h + aux[:, k:k + 1] * x[k:k + 1, :]
    h = jnp.maximum(h + aux[:, COL_B1:COL_B1 + 1], 0.0)          # (128, tb)

    # ---- Layers 2 & 3: zero-padded 128x128 MXU matmuls, f32 accumulate. ---
    h = jnp.dot(w2_ref[...], h.astype(w2_ref.dtype),
                preferred_element_type=jnp.float32)
    h = jnp.maximum(h + aux[:, COL_B2:COL_B2 + 1], 0.0)
    h = jnp.dot(w3_ref[...], h.astype(w3_ref.dtype),
                preferred_element_type=jnp.float32)
    h = jnp.maximum(h + aux[:, COL_B3:COL_B3 + 1], 0.0)          # h[H3,:] == 1

    # ---- Layer 4: 32 -> 1 as VPU multiply + sublane reduction. ------------
    # b4 is folded in exactly: aux[H3, COL_B3] = 1 forces h[H3, :] == 1 and
    # aux[H3, COL_W4] = b4, so the reduction adds b4 with no extra operand.
    v = jnp.sum(h * aux[:, COL_W4:COL_W4 + 1], axis=0, keepdims=True)
    out_ref[...] = v.astype(out_ref.dtype)                       # (1, tb)


def init_params(key):
    """Deterministic init mimicking nn.Linear default (U(+/-1/sqrt(fan_in))).

    Weights are kept in PyTorch layout (out_features, in_features); biases
    are (out_features,).
    """
    dims = [(H1, STATE_SIZE), (H2, H1), (H3, H2), (OUT, H3)]
    params = []
    for (fan_out, fan_in) in dims:
        key, kw, kb = jax.random.split(key, 3)
        bound = 1.0 / float(fan_in) ** 0.5
        w = jax.random.uniform(kw, (fan_out, fan_in), jnp.float32, -bound, bound)
        b = jax.random.uniform(kb, (fan_out,), jnp.float32, -bound, bound)
        params.append((w, b))
    return params


def pack_params(params, *, matmul_dtype=jnp.float32):
    """Pack into kernel operands.

    aux (128, 8) f32: cols 0..3 = w1, col 4 = b1, 5 = b2, 6 = b3, 7 = w4.
    b4 is folded into rows H3 of cols 6/7 (see kernel comment) -- exact.
    w2p/w3p (128, 128): zero-padded; optionally bf16 (changes numerics).
    """
    (w1, b1), (w2, b2), (w3, b3), (w4, b4) = params

    aux = jnp.zeros((LANE, 8), jnp.float32)
    aux = aux.at[:H1, 0:STATE_SIZE].set(w1)          # (32, 4)
    aux = aux.at[:H1, COL_B1].set(b1)
    aux = aux.at[:H2, COL_B2].set(b2)
    aux = aux.at[:H3, COL_B3].set(b3)
    aux = aux.at[:H3, COL_W4].set(w4[0])             # (32,)
    aux = aux.at[H3, COL_B3].set(1.0)                # force h3[H3, :] == 1
    aux = aux.at[H3, COL_W4].set(b4[0])              # ... weighted by b4

    def pad_sq(w):
        p = jnp.zeros((LANE, LANE), jnp.float32)
        return p.at[: w.shape[0], : w.shape[1]].set(w).astype(matmul_dtype)

    return aux, pad_sq(w2), pad_sq(w3)


def _dual_core_chip():
    """True on chips with 2 TensorCores per Pallas device (v4/v5p/v7x)."""
    try:
        kind = jax.devices()[0].device_kind.lower().replace(" ", "")
        return any(tag in kind for tag in ("v4", "v5p", "v7", "7x"))
    except Exception:
        return False


def _choose_tiling(B, cap):
    """Balanced, 128-lane-aligned batch tiles; >=2 tiles on dual-TC chips."""
    num_tiles = max(1, _cdiv(B, cap))
    if _dual_core_chip() and B >= 2 * LANE:
        num_tiles = _round_up(num_tiles, 2)
    tb = _round_up(_cdiv(B, num_tiles), LANE)
    return num_tiles, tb


def critic_forward(state, packed_params, *, cap=1024):
    """state: (B, STATE_SIZE) f32 -> value: (B, 1) f32."""
    aux, w2p, w3p = packed_params
    B = state.shape[0]
    num_tiles, tb = _choose_tiling(B, cap)
    Bp = num_tiles * tb

    # Transposed domain: features on sublanes, batch on lanes (lane-dense).
    xT = state.T                                     # (STATE_SIZE, B)
    if Bp != B:
        xT = jnp.pad(xT, ((0, 0), (0, Bp - B)))

    def const(a):
        return pl.BlockSpec(a.shape, lambda i: (0, 0))   # VMEM-resident weights

    flops = 2 * Bp * (STATE_SIZE * LANE + 2 * LANE * LANE + LANE)
    bytes_weights = (aux.size * 4
                     + w2p.size * w2p.dtype.itemsize
                     + w3p.size * w3p.dtype.itemsize)
    bytes_accessed = 4 * (STATE_SIZE * Bp + Bp) + bytes_weights

    out = pl.pallas_call(
        critic_kernel,
        out_shape=jax.ShapeDtypeStruct((1, Bp), jnp.float32),
        grid_spec=pltpu.PrefetchScalarGridSpec(
            num_scalar_prefetch=0,
            grid=(num_tiles,),
            in_specs=[
                pl.BlockSpec((STATE_SIZE, tb), lambda i: (0, i)),  # batch-tiled state
                const(aux), const(w2p), const(w3p),
            ],
            out_specs=pl.BlockSpec((1, tb), lambda i: (0, i)),     # lane-dense row
        ),
        compiler_params=pltpu.CompilerParams(
            dimension_semantics=("parallel",)),
        cost_estimate=pl.CostEstimate(
            flops=flops, transcendentals=0, bytes_accessed=bytes_accessed),
    )(xT, aux, w2p, w3p)

    return out[0, :B, None]                          # (B, 1)


def critic_forward_ref(state, params):
    """Pure-JAX reference of the PyTorch forward for validation."""
    (w1, b1), (w2, b2), (w3, b3), (w4, b4) = params
    h = jnp.maximum(state @ w1.T + b1, 0.0)
    h = jnp.maximum(h @ w2.T + b2, 0.0)
    h = jnp.maximum(h @ w3.T + b3, 0.0)
    return h @ w4.T + b4


if __name__ == "__main__":
    key = jax.random.PRNGKey(0)
    key, k1, k2 = jax.random.split(key, 3)

    params = init_params(key)
    packed = pack_params(params)

    # Small batch of CartPole states (single 128-lane tile).
    B = 8
    state = jax.random.normal(k1, (B, STATE_SIZE), dtype=jnp.float32)
    value = jax.block_until_ready(critic_forward(state, packed))
    ref = critic_forward_ref(state, params)
    assert value.shape == (B, 1), value.shape
    assert jnp.allclose(value, ref, atol=1e-5, rtol=1e-5), (
        f"mismatch: max abs err {jnp.max(jnp.abs(value - ref))}")

    # Larger, non-multiple batch (balanced tiling; 2 tiles on dual-TC chips).
    B2 = 300
    state2 = jax.random.normal(k2, (B2, STATE_SIZE), dtype=jnp.float32)
    value2 = jax.block_until_ready(critic_forward(state2, packed))
    ref2 = critic_forward_ref(state2, params)
    assert value2.shape == (B2, 1), value2.shape
    assert jnp.allclose(value2, ref2, atol=1e-5, rtol=1e-5), (
        f"mismatch: max abs err {jnp.max(jnp.abs(value2 - ref2))}")

    # Force a multi-tile grid (exercises the pipelined path on any chip).
    value3 = jax.block_until_ready(critic_forward(state2, packed, cap=128))
    assert value3.shape == (B2, 1), value3.shape
    assert jnp.allclose(value3, ref2, atol=1e-5, rtol=1e-5), (
        f"mismatch: max abs err {jnp.max(jnp.abs(value3 - ref2))}")

    # Optional bf16 weights for the two 128x128 MXU layers (v6e/v7x rate);
    # intentionally not bit-exact vs. the f32 PyTorch forward.
    packed_bf16 = pack_params(params, matmul_dtype=jnp.bfloat16)
    value4 = jax.block_until_ready(critic_forward(state2, packed_bf16))
    assert value4.shape == (B2, 1), value4.shape
    assert jnp.allclose(value4, ref2, atol=3e-2, rtol=3e-2), (
        f"bf16 mismatch: max abs err {jnp.max(jnp.abs(value4 - ref2))}")

    print("KERNEL_OK")
</pallas_src>

<mosaic_0001>
module attributes {stable_mosaic.version = 11 : i64} {
  func.func @critic_kernel(%arg0: i32, %arg1: memref<4x128xf32, #tpu.memory_space<vmem>>, %arg2: memref<128x8xf32, #tpu.memory_space<vmem>>, %arg3: memref<128x128xf32, #tpu.memory_space<vmem>>, %arg4: memref<128x128xf32, #tpu.memory_space<vmem>>, %arg5: memref<1x128xf32, #tpu.memory_space<vmem>>) attributes {dimension_semantics = [#tpu.dimension_semantics<parallel>], iteration_bounds = array<i64: 1>, scalar_prefetch = 0 : i64, scratch_operands = 0 : i64, tpu.core_type = #tpu.core_type<tc>, window_params = [{transform_indices = @transform_0, window_bounds = array<i64: 4, 128>}, {pipeline_mode = #tpu.pipeline_mode<synchronous>, transform_indices = @transform_1, window_bounds = array<i64: 128, 8>}, {pipeline_mode = #tpu.pipeline_mode<synchronous>, transform_indices = @transform_2, window_bounds = array<i64: 128, 128>}, {pipeline_mode = #tpu.pipeline_mode<synchronous>, transform_indices = @transform_3, window_bounds = array<i64: 128, 128>}, {transform_indices = @transform_4, window_bounds = array<i64: 1, 128>}]} {
    %c0 = arith.constant 0 : index
    %c0_0 = arith.constant 0 : index
    %0 = vector.load %arg1[%c0, %c0_0] : memref<4x128xf32, #tpu.memory_space<vmem>>, vector<4x128xf32>
    %c0_1 = arith.constant 0 : index
    %c0_2 = arith.constant 0 : index
    %1 = vector.load %arg2[%c0_1, %c0_2] : memref<128x8xf32, #tpu.memory_space<vmem>>, vector<128x8xf32>
    %2 = vector.extract_strided_slice %1 {offsets = [0, 0], sizes = [128, 1], strides = [1, 1]} : vector<128x8xf32> to vector<128x1xf32>
    %3 = vector.extract_strided_slice %0 {offsets = [0, 0], sizes = [1, 128], strides = [1, 1]} : vector<4x128xf32> to vector<1x128xf32>
    %4 = vector.broadcast %2 : vector<128x1xf32> to vector<128x128xf32>
    %5 = vector.broadcast %3 : vector<1x128xf32> to vector<128x128xf32>
    %6 = arith.mulf %4, %5 : vector<128x128xf32>
    %7 = vector.extract_strided_slice %1 {offsets = [0, 1], sizes = [128, 1], strides = [1, 1]} : vector<128x8xf32> to vector<128x1xf32>
    %8 = vector.extract_strided_slice %0 {offsets = [1, 0], sizes = [1, 128], strides = [1, 1]} : vector<4x128xf32> to vector<1x128xf32>
    %9 = vector.broadcast %7 : vector<128x1xf32> to vector<128x128xf32>
    %10 = vector.broadcast %8 : vector<1x128xf32> to vector<128x128xf32>
    %11 = arith.mulf %9, %10 : vector<128x128xf32>
    %12 = arith.addf %6, %11 : vector<128x128xf32>
    %13 = vector.extract_strided_slice %1 {offsets = [0, 2], sizes = [128, 1], strides = [1, 1]} : vector<128x8xf32> to vector<128x1xf32>
    %14 = vector.extract_strided_slice %0 {offsets = [2, 0], sizes = [1, 128], strides = [1, 1]} : vector<4x128xf32> to vector<1x128xf32>
    %15 = vector.broadcast %13 : vector<128x1xf32> to vector<128x128xf32>
    %16 = vector.broadcast %14 : vector<1x128xf32> to vector<128x128xf32>
    %17 = arith.mulf %15, %16 : vector<128x128xf32>
    %18 = arith.addf %12, %17 : vector<128x128xf32>
    %19 = vector.extract_strided_slice %1 {offsets = [0, 3], sizes = [128, 1], strides = [1, 1]} : vector<128x8xf32> to vector<128x1xf32>
    %20 = vector.extract_strided_slice %0 {offsets = [3, 0], sizes = [1, 128], strides = [1, 1]} : vector<4x128xf32> to vector<1x128xf32>
    %21 = vector.broadcast %19 : vector<128x1xf32> to vector<128x128xf32>
    %22 = vector.broadcast %20 : vector<1x128xf32> to vector<128x128xf32>
    %23 = arith.mulf %21, %22 : vector<128x128xf32>
    %24 = arith.addf %18, %23 : vector<128x128xf32>
    %25 = vector.extract_strided_slice %1 {offsets = [0, 4], sizes = [128, 1], strides = [1, 1]} : vector<128x8xf32> to vector<128x1xf32>
    %26 = vector.broadcast %25 : vector<128x1xf32> to vector<128x128xf32>
    %27 = arith.addf %24, %26 : vector<128x128xf32>
    %cst = arith.constant 0.000000e+00 : f32
    %28 = vector.broadcast %cst : f32 to vector<128x128xf32>
    %29 = arith.maximumf %27, %28 : vector<128x128xf32>
    %c0_3 = arith.constant 0 : index
    %c0_4 = arith.constant 0 : index
    %30 = vector.load %arg3[%c0_3, %c0_4] : memref<128x128xf32, #tpu.memory_space<vmem>>, vector<128x128xf32>
    %cst_5 = arith.constant dense<0.000000e+00> : vector<128x128xf32>
    %31 = tpu.matmul %30, %29, %cst_5 {dimension_numbers = #tpu.dot_dimension_numbers<[1], [0], [0], [1], [0, 0, 1, 1], [], []>} : vector<128x128xf32>, vector<128x128xf32>, vector<128x128xf32> -> vector<128x128xf32>
    %32 = vector.extract_strided_slice %1 {offsets = [0, 5], sizes = [128, 1], strides = [1, 1]} : vector<128x8xf32> to vector<128x1xf32>
    %33 = vector.broadcast %32 : vector<128x1xf32> to vector<128x128xf32>
    %34 = arith.addf %31, %33 : vector<128x128xf32>
    %cst_6 = arith.constant 0.000000e+00 : f32
    %35 = vector.broadcast %cst_6 : f32 to vector<128x128xf32>
    %36 = arith.maximumf %34, %35 : vector<128x128xf32>
    %c0_7 = arith.constant 0 : index
    %c0_8 = arith.constant 0 : index
    %37 = vector.load %arg4[%c0_7, %c0_8] : memref<128x128xf32, #tpu.memory_space<vmem>>, vector<128x128xf32>
    %cst_9 = arith.constant dense<0.000000e+00> : vector<128x128xf32>
    %38 = tpu.matmul %37, %36, %cst_9 {dimension_numbers = #tpu.dot_dimension_numbers<[1], [0], [0], [1], [0, 0, 1, 1], [], []>} : vector<128x128xf32>, vector<128x128xf32>, vector<128x128xf32> -> vector<128x128xf32>
    %39 = vector.extract_strided_slice %1 {offsets = [0, 6], sizes = [128, 1], strides = [1, 1]} : vector<128x8xf32> to vector<128x1xf32>
    %40 = vector.broadcast %39 : vector<128x1xf32> to vector<128x128xf32>
    %41 = arith.addf %38, %40 : vector<128x128xf32>
    %cst_10 = arith.constant 0.000000e+00 : f32
    %42 = vector.broadcast %cst_10 : f32 to vector<128x128xf32>
    %43 = arith.maximumf %41, %42 : vector<128x128xf32>
    %44 = vector.extract_strided_slice %1 {offsets = [0, 7], sizes = [128, 1], strides = [1, 1]} : vector<128x8xf32> to vector<128x1xf32>
    %45 = vector.broadcast %44 : vector<128x1xf32> to vector<128x128xf32>
    %46 = arith.mulf %43, %45 : vector<128x128xf32>
    %cst_11 = arith.constant dense<0.000000e+00> : vector<128xf32>
    %47 = vector.multi_reduction <add>, %46, %cst_11 [0] : vector<128x128xf32> to vector<128xf32>
    %48 = vector.shape_cast %47 : vector<128xf32> to vector<1x128xf32>
    %c0_12 = arith.constant 0 : index
    %c0_13 = arith.constant 0 : index
    %49 = vector.load %arg5[%c0_12, %c0_13] : memref<1x128xf32, #tpu.memory_space<vmem>>, vector<1x128xf32>
    tpu.vector_store %arg5[%c0_12, %c0_13], %48 {strides = array<i32>} : memref<1x128xf32, #tpu.memory_space<vmem>>, vector<1x128xf32>,
    return
  }
  func.func @transform_0(%arg0: i32) -> (i32, i32) {
    %c0_i32 = arith.constant 0 : i32
    %c0_i32_0 = arith.constant 0 : i32
    return %c0_i32, %arg0 : i32, i32
  }
  func.func @transform_1(%arg0: i32) -> (i32, i32) {
    %c0_i32 = arith.constant 0 : i32
    %c0_i32_0 = arith.constant 0 : i32
    %c0_i32_1 = arith.constant 0 : i32
    return %c0_i32, %c0_i32_0 : i32, i32
  }
  func.func @transform_2(%arg0: i32) -> (i32, i32) {
    %c0_i32 = arith.constant 0 : i32
    %c0_i32_0 = arith.constant 0 : i32
    %c0_i32_1 = arith.constant 0 : i32
    return %c0_i32, %c0_i32_0 : i32, i32
  }
  func.func @transform_3(%arg0: i32) -> (i32, i32) {
    %c0_i32 = arith.constant 0 : i32
    %c0_i32_0 = arith.constant 0 : i32
    %c0_i32_1 = arith.constant 0 : i32
    return %c0_i32, %c0_i32_0 : i32, i32
  }
  func.func @transform_4(%arg0: i32) -> (i32, i32) {
    %c0_i32 = arith.constant 0 : i32
    %c0_i32_0 = arith.constant 0 : i32
    return %c0_i32, %arg0 : i32, i32
  }
}

</mosaic_0001>

<llo_original>
// kernel: tpu_custom_call.1
$region0: #{tpu_custom_call.1}
  #allocation0 [shape = 'u32[]', space=smem, size = 0x4, offset = 0x4, fixed_abs, tag = 'smem constant byte address 0x4 - core index']
  #allocation1 [shape = 'u32[144,128]{1,0:T(1,128)}', space=vmem, size = 0x12000, scoped, tag = 'internal scratch']
  %s0 = inlined_call_operand.vmem [shape: f32[4,128], index: 0, kind: input, shape index: {}]
  %s1 = inlined_call_operand.vmem [shape: f32[128,8], index: 1, kind: input, shape index: {}]
  %s2 = inlined_call_operand.vmem [shape: f32[128,128], index: 2, kind: input, shape index: {}]
  %s3 = inlined_call_operand.hbm [shape: f32[128,128], index: 3, kind: input, shape index: {}]
  %s4 = inlined_call_operand.hbm [shape: f32[1,128], index: 4, kind: output, shape index: {}]
  %s5 = sld [smem:[#allocation0]]
  $region30: #{tpu_custom_call.1} parent=0
    _
  %s7 = ssub.s32 1, %s5
  %s8 = scalar_select 0, %s7, %s5
  $region1: #{tpu_custom_call.1} parent=0
    #allocation2 [shape = 'u8[65536]{0}', space=vmem, size = 0x10000, scoped, tag = 'input window, operand 3, single buffered']
    #allocation3 [shape = 's32[1]{0}', space=sflag, size = 0x4, scoped, tag = 'scoped memory for tpu_custom_call.1']
    #allocation4 [shape = 's32[1]{0}', space=sflag, size = 0x4, scoped, tag = 'scoped memory for tpu_custom_call.1']
    #allocation5 [shape = 'u8[512]{0}', space=vmem, size = 0x400, scoped, tag = 'output window, operand 0, single buffered']
    %9 = vsyncpa [#allocation3], 0
    %10 = vsyncpa [#allocation4], 0
    // Predicated region
    $region2: #{tpu_custom_call.1} parent=1 // pred_check
      _
    $region3: #{tpu_custom_call.1} parent=1 // pred_check_branch
      %12 = sbr.rel (0) target = $region5
    $region4: #{tpu_custom_call.1} parent=1 // pred_region
      _
    $region5: #{tpu_custom_call.1} parent=1 // pred_fallthru
      _
    // Predicated region
    $region6: #{tpu_custom_call.1} parent=1 // pred_check
      _
    $region7: #{tpu_custom_call.1} parent=1 // pred_check_branch
      %14 = sbr.rel (0) target = $region9
    $region8: #{tpu_custom_call.1} parent=1 // pred_region
      _
    $region9: #{tpu_custom_call.1} parent=1 // pred_fallthru
      _
    // Predicated region
    $region10: #{tpu_custom_call.1} parent=1 // pred_check
      _
    $region11: #{tpu_custom_call.1} parent=1 // pred_check_branch
      %16 = sbr.rel (0) target = $region13
    $region12: #{tpu_custom_call.1} parent=1 // pred_region
      _
    $region13: #{tpu_custom_call.1} parent=1 // pred_fallthru
      _
    // Predicated region
    $region14: #{tpu_custom_call.1} parent=1 // pred_check
      _
    $region15: #{tpu_custom_call.1} parent=1 // pred_check_branch
      %18 = sbr.rel (0) target = $region17
    $region16: #{tpu_custom_call.1} parent=1 // pred_region
      %s20 = ssub.s32 2048, 2048
      %21 = vsyncadd [#allocation3], %s20
      %s22 = sshll.u32 [#allocation2], 4
      %s23 = int_to_ptr.vmem [resolvable:$true] %s22
      %28 = dma.hbm_to_vmem [thread:$0]  %s3, 2048, %s23, [#allocation3], 128, 128, 8
    $region17: #{tpu_custom_call.1} parent=1 // pred_fallthru
      _
    // Predicated region
    $region18: #{tpu_custom_call.1} parent=1 // pred_check
      _
    $region19: #{tpu_custom_call.1} parent=1 // pred_check_branch
      %30 = sbr.rel (0) target = $region21
    $region20: #{tpu_custom_call.1} parent=1 // pred_region
      %31 = dma.done [#allocation3], 2048
    $region21: #{tpu_custom_call.1} parent=1 // pred_fallthru
      _
    %v32 = vld [vmem:[%s0] sm:$0xf]
    %v33 = vld [vmem:[%s1] sm:$0xff]
    %v34 = vld [vmem:[%s1 + $0x8] sm:$0xff]
    %v35 = vld [vmem:[%s1 + $0x10] sm:$0xff]
    %v36 = vld [vmem:[%s1 + $0x18] sm:$0xff]
    %v37 = vld [vmem:[%s1 + $0x20] sm:$0xff]
    %v38 = vld [vmem:[%s1 + $0x28] sm:$0xff]
    %v39 = vld [vmem:[%s1 + $0x30] sm:$0xff]
    %v40 = vld [vmem:[%s1 + $0x38] sm:$0xff]
    %v41 = vld [vmem:[%s1 + $0x40] sm:$0xff]
    %v42 = vld [vmem:[%s1 + $0x48] sm:$0xff]
    %v43 = vld [vmem:[%s1 + $0x50] sm:$0xff]
    %v44 = vld [vmem:[%s1 + $0x58] sm:$0xff]
    %v45 = vld [vmem:[%s1 + $0x60] sm:$0xff]
    %v46 = vld [vmem:[%s1 + $0x68] sm:$0xff]
    %v47 = vld [vmem:[%s1 + $0x70] sm:$0xff]
    %v48 = vld [vmem:[%s1 + $0x78] sm:$0xff]
    %50 = vset.pattern.permute.xlu0 0
    %51 = vperm.xlu0 %50, %v33
    %v52 = vpop.permute.xlu0 %51
    %55 = vset.pattern.permute.xlu0 0
    %56 = vperm.xlu0 %55, %v34
    %v57 = vpop.permute.xlu0 %56
    %60 = vset.pattern.permute.xlu0 0
    %61 = vperm.xlu0 %60, %v35
    %v62 = vpop.permute.xlu0 %61
    %65 = vset.pattern.permute.xlu0 0
    %66 = vperm.xlu0 %65, %v36
    %v67 = vpop.permute.xlu0 %66
    %70 = vset.pattern.permute.xlu0 0
    %71 = vperm.xlu0 %70, %v37
    %v72 = vpop.permute.xlu0 %71
    %75 = vset.pattern.permute.xlu0 0
    %76 = vperm.xlu0 %75, %v38
    %v77 = vpop.permute.xlu0 %76
    %80 = vset.pattern.permute.xlu0 0
    %81 = vperm.xlu0 %80, %v39
    %v82 = vpop.permute.xlu0 %81
    %85 = vset.pattern.permute.xlu0 0
    %86 = vperm.xlu0 %85, %v40
    %v87 = vpop.permute.xlu0 %86
    %90 = vset.pattern.permute.xlu0 0
    %91 = vperm.xlu0 %90, %v41
    %v92 = vpop.permute.xlu0 %91
    %95 = vset.pattern.permute.xlu0 0
    %96 = vperm.xlu0 %95, %v42
    %v97 = vpop.permute.xlu0 %96
    %100 = vset.pattern.permute.xlu0 0
    %101 = vperm.xlu0 %100, %v43
    %v102 = vpop.permute.xlu0 %101
    %105 = vset.pattern.permute.xlu0 0
    %106 = vperm.xlu0 %105, %v44
    %v107 = vpop.permute.xlu0 %106
    %110 = vset.pattern.permute.xlu0 0
    %111 = vperm.xlu0 %110, %v45
    %v112 = vpop.permute.xlu0 %111
    %115 = vset.pattern.permute.xlu0 0
    %116 = vperm.xlu0 %115, %v46
    %v117 = vpop.permute.xlu0 %116
    %120 = vset.pattern.permute.xlu0 0
    %121 = vperm.xlu0 %120, %v47
    %v122 = vpop.permute.xlu0 %121
    %125 = vset.pattern.permute.xlu0 0
    %126 = vperm.xlu0 %125, %v48
    %v127 = vpop.permute.xlu0 %126
    %v129 = vlaneseq
    %v130 = vshrl.u32 %v129, 7
    %v131 = vsub.s32 0, %v130
    %v132 = vrot.slane %v32, %v131
    %v133 = vmul.f32 %v52, %v132
    %v134 = vmul.f32 %v57, %v132
    %v135 = vmul.f32 %v62, %v132
    %v136 = vmul.f32 %v67, %v132
    %v137 = vmul.f32 %v72, %v132
    %v138 = vmul.f32 %v77, %v132
    %v139 = vmul.f32 %v82, %v132
    %v140 = vmul.f32 %v87, %v132
    %v141 = vmul.f32 %v92, %v132
    %v142 = vmul.f32 %v97, %v132
    %v143 = vmul.f32 %v102, %v132
    %v144 = vmul.f32 %v107, %v132
    %v145 = vmul.f32 %v112, %v132
    %v146 = vmul.f32 %v117, %v132
    %v147 = vmul.f32 %v122, %v132
    %v148 = vmul.f32 %v127, %v132
    %149 = vset.pattern.permute.xlu0 1
    %150 = vperm.xlu0 %149, %v33
    %v151 = vpop.permute.xlu0 %150
    %153 = vset.pattern.permute.xlu0 1
    %154 = vperm.xlu0 %153, %v34
    %v155 = vpop.permute.xlu0 %154
    %157 = vset.pattern.permute.xlu0 1
    %158 = vperm.xlu0 %157, %v35
    %v159 = vpop.permute.xlu0 %158
    %161 = vset.pattern.permute.xlu0 1
    %162 = vperm.xlu0 %161, %v36
    %v163 = vpop.permute.xlu0 %162
    %165 = vset.pattern.permute.xlu0 1
    %166 = vperm.xlu0 %165, %v37
    %v167 = vpop.permute.xlu0 %166
    %169 = vset.pattern.permute.xlu0 1
    %170 = vperm.xlu0 %169, %v38
    %v171 = vpop.permute.xlu0 %170
    %173 = vset.pattern.permute.xlu0 1
    %174 = vperm.xlu0 %173, %v39
    %v175 = vpop.permute.xlu0 %174
    %177 = vset.pattern.permute.xlu0 1
    %178 = vperm.xlu0 %177, %v40
    %v179 = vpop.permute.xlu0 %178
    %181 = vset.pattern.permute.xlu0 1
    %182 = vperm.xlu0 %181, %v41
    %v183 = vpop.permute.xlu0 %182
    %185 = vset.pattern.permute.xlu0 1
    %186 = vperm.xlu0 %185, %v42
    %v187 = vpop.permute.xlu0 %186
    %189 = vset.pattern.permute.xlu0 1
    %190 = vperm.xlu0 %189, %v43
    %v191 = vpop.permute.xlu0 %190
    %193 = vset.pattern.permute.xlu0 1
    %194 = vperm.xlu0 %193, %v44
    %v195 = vpop.permute.xlu0 %194
    %197 = vset.pattern.permute.xlu0 1
    %198 = vperm.xlu0 %197, %v45
    %v199 = vpop.permute.xlu0 %198
    %201 = vset.pattern.permute.xlu0 1
    %202 = vperm.xlu0 %201, %v46
    %v203 = vpop.permute.xlu0 %202
    %205 = vset.pattern.permute.xlu0 1
    %206 = vperm.xlu0 %205, %v47
    %v207 = vpop.permute.xlu0 %206
    %209 = vset.pattern.permute.xlu0 1
    %210 = vperm.xlu0 %209, %v48
    %v211 = vpop.permute.xlu0 %210
    %v213 = vlaneseq
    %v214 = vshrl.u32 %v213, 7
    %v215 = vsub.s32 1, %v214
    %v216 = vrot.slane %v32, %v215
    %v217 = vmul.f32 %v151, %v216
    %v218 = vmul.f32 %v155, %v216
    %v219 = vmul.f32 %v159, %v216
    %v220 = vmul.f32 %v163, %v216
    %v221 = vmul.f32 %v167, %v216
    %v222 = vmul.f32 %v171, %v216
    %v223 = vmul.f32 %v175, %v216
    %v224 = vmul.f32 %v179, %v216
    %v225 = vmul.f32 %v183, %v216
    %v226 = vmul.f32 %v187, %v216
    %v227 = vmul.f32 %v191, %v216
    %v228 = vmul.f32 %v195, %v216
    %v229 = vmul.f32 %v199, %v216
    %v230 = vmul.f32 %v203, %v216
    %v231 = vmul.f32 %v207, %v216
    %v232 = vmul.f32 %v211, %v216
    %v233 = vadd.f32 %v133, %v217
    %v234 = vadd.f32 %v134, %v218
    %v235 = vadd.f32 %v135, %v219
    %v236 = vadd.f32 %v136, %v220
    %v237 = vadd.f32 %v137, %v221
    %v238 = vadd.f32 %v138, %v222
    %v239 = vadd.f32 %v139, %v223
    %v240 = vadd.f32 %v140, %v224
    %v241 = vadd.f32 %v141, %v225
    %v242 = vadd.f32 %v142, %v226
    %v243 = vadd.f32 %v143, %v227
    %v244 = vadd.f32 %v144, %v228
    %v245 = vadd.f32 %v145, %v229
    %v246 = vadd.f32 %v146, %v230
    %v247 = vadd.f32 %v147, %v231
    %v248 = vadd.f32 %v148, %v232
    %249 = vset.pattern.permute.xlu0 2
    %250 = vperm.xlu0 %249, %v33
    %v251 = vpop.permute.xlu0 %250
    %253 = vset.pattern.permute.xlu0 2
    %254 = vperm.xlu0 %253, %v34
    %v255 = vpop.permute.xlu0 %254
    %257 = vset.pattern.permute.xlu0 2
    %258 = vperm.xlu0 %257, %v35
    %v259 = vpop.permute.xlu0 %258
    %261 = vset.pattern.permute.xlu0 2
    %262 = vperm.xlu0 %261, %v36
    %v263 = vpop.permute.xlu0 %262
    %265 = vset.pattern.permute.xlu0 2
    %266 = vperm.xlu0 %265, %v37
    %v267 = vpop.permute.xlu0 %266
    %269 = vset.pattern.permute.xlu0 2
    %270 = vperm.xlu0 %269, %v38
    %v271 = vpop.permute.xlu0 %270
    %273 = vset.pattern.permute.xlu0 2
    %274 = vperm.xlu0 %273, %v39
    %v275 = vpop.permute.xlu0 %274
    %277 = vset.pattern.permute.xlu0 2
    %278 = vperm.xlu0 %277, %v40
    %v279 = vpop.permute.xlu0 %278
    %281 = vset.pattern.permute.xlu0 2
    %282 = vperm.xlu0 %281, %v41
    %v283 = vpop.permute.xlu0 %282
    %285 = vset.pattern.permute.xlu0 2
    %286 = vperm.xlu0 %285, %v42
    %v287 = vpop.permute.xlu0 %286
    %289 = vset.pattern.permute.xlu0 2
    %290 = vperm.xlu0 %289, %v43
    %v291 = vpop.permute.xlu0 %290
    %293 = vset.pattern.permute.xlu0 2
    %294 = vperm.xlu0 %293, %v44
    %v295 = vpop.permute.xlu0 %294
    %297 = vset.pattern.permute.xlu0 2
    %298 = vperm.xlu0 %297, %v45
    %v299 = vpop.permute.xlu0 %298
    %301 = vset.pattern.permute.xlu0 2
    %302 = vperm.xlu0 %301, %v46
    %v303 = vpop.permute.xlu0 %302
    %305 = vset.pattern.permute.xlu0 2
    %306 = vperm.xlu0 %305, %v47
    %v307 = vpop.permute.xlu0 %306
    %309 = vset.pattern.permute.xlu0 2
    %310 = vperm.xlu0 %309, %v48
    %v311 = vpop.permute.xlu0 %310
    %v313 = vlaneseq
    %v314 = vshrl.u32 %v313, 7
    %v315 = vsub.s32 2, %v314
    %v316 = vrot.slane %v32, %v315
    %v317 = vmul.f32 %v251, %v316
    %v318 = vmul.f32 %v255, %v316
    %v319 = vmul.f32 %v259, %v316
    %v320 = vmul.f32 %v263, %v316
    %v321 = vmul.f32 %v267, %v316
    %v322 = vmul.f32 %v271, %v316
    %v323 = vmul.f32 %v275, %v316
    %v324 = vmul.f32 %v279, %v316
    %v325 = vmul.f32 %v283, %v316
    %v326 = vmul.f32 %v287, %v316
    %v327 = vmul.f32 %v291, %v316
    %v328 = vmul.f32 %v295, %v316
    %v329 = vmul.f32 %v299, %v316
    %v330 = vmul.f32 %v303, %v316
    %v331 = vmul.f32 %v307, %v316
    %v332 = vmul.f32 %v311, %v316
    %v333 = vadd.f32 %v233, %v317
    %v334 = vadd.f32 %v234, %v318
    %v335 = vadd.f32 %v235, %v319
    %v336 = vadd.f32 %v236, %v320
    %v337 = vadd.f32 %v237, %v321
    %v338 = vadd.f32 %v238, %v322
    %v339 = vadd.f32 %v239, %v323
    %v340 = vadd.f32 %v240, %v324
    %v341 = vadd.f32 %v241, %v325
    %v342 = vadd.f32 %v242, %v326
    %v343 = vadd.f32 %v243, %v327
    %v344 = vadd.f32 %v244, %v328
    %v345 = vadd.f32 %v245, %v329
    %v346 = vadd.f32 %v246, %v330
    %v347 = vadd.f32 %v247, %v331
    %v348 = vadd.f32 %v248, %v332
    %349 = vset.pattern.permute.xlu0 3
    %350 = vperm.xlu0 %349, %v33
    %v351 = vpop.permute.xlu0 %350
    %353 = vset.pattern.permute.xlu0 3
    %354 = vperm.xlu0 %353, %v34
    %v355 = vpop.permute.xlu0 %354
    %357 = vset.pattern.permute.xlu0 3
    %358 = vperm.xlu0 %357, %v35
    %v359 = vpop.permute.xlu0 %358
    %361 = vset.pattern.permute.xlu0 3
    %362 = vperm.xlu0 %361, %v36
    %v363 = vpop.permute.xlu0 %362
    %365 = vset.pattern.permute.xlu0 3
    %366 = vperm.xlu0 %365, %v37
    %v367 = vpop.permute.xlu0 %366
    %369 = vset.pattern.permute.xlu0 3
    %370 = vperm.xlu0 %369, %v38
    %v371 = vpop.permute.xlu0 %370
    %373 = vset.pattern.permute.xlu0 3
    %374 = vperm.xlu0 %373, %v39
    %v375 = vpop.permute.xlu0 %374
    %377 = vset.pattern.permute.xlu0 3
    %378 = vperm.xlu0 %377, %v40
    %v379 = vpop.permute.xlu0 %378
    %381 = vset.pattern.permute.xlu0 3
    %382 = vperm.xlu0 %381, %v41
    %v383 = vpop.permute.xlu0 %382
    %385 = vset.pattern.permute.xlu0 3
    %386 = vperm.xlu0 %385, %v42
    %v387 = vpop.permute.xlu0 %386
    %389 = vset.pattern.permute.xlu0 3
    %390 = vperm.xlu0 %389, %v43
    %v391 = vpop.permute.xlu0 %390
    %393 = vset.pattern.permute.xlu0 3
    %394 = vperm.xlu0 %393, %v44
    %v395 = vpop.permute.xlu0 %394
    %397 = vset.pattern.permute.xlu0 3
    %398 = vperm.xlu0 %397, %v45
    %v399 = vpop.permute.xlu0 %398
    %401 = vset.pattern.permute.xlu0 3
    %402 = vperm.xlu0 %401, %v46
    %v403 = vpop.permute.xlu0 %402
    %405 = vset.pattern.permute.xlu0 3
    %406 = vperm.xlu0 %405, %v47
    %v407 = vpop.permute.xlu0 %406
    %409 = vset.pattern.permute.xlu0 3
    %410 = vperm.xlu0 %409, %v48
    %v411 = vpop.permute.xlu0 %410
    %v413 = vlaneseq
    %v414 = vshrl.u32 %v413, 7
    %v415 = vsub.s32 3, %v414
    %v416 = vrot.slane %v32, %v415
    %v417 = vmul.f32 %v351, %v416
    %v418 = vmul.f32 %v355, %v416
    %v419 = vmul.f32 %v359, %v416
    %v420 = vmul.f32 %v363, %v416
    %v421 = vmul.f32 %v367, %v416
    %v422 = vmul.f32 %v371, %v416
    %v423 = vmul.f32 %v375, %v416
    %v424 = vmul.f32 %v379, %v416
    %v425 = vmul.f32 %v383, %v416
    %v426 = vmul.f32 %v387, %v416
    %v427 = vmul.f32 %v391, %v416
    %v428 = vmul.f32 %v395, %v416
    %v429 = vmul.f32 %v399, %v416
    %v430 = vmul.f32 %v403, %v416
    %v431 = vmul.f32 %v407, %v416
    %v432 = vmul.f32 %v411, %v416
    %v433 = vadd.f32 %v333, %v417
    %v434 = vadd.f32 %v334, %v418
    %v435 = vadd.f32 %v335, %v419
    %v436 = vadd.f32 %v336, %v420
    %v437 = vadd.f32 %v337, %v421
    %v438 = vadd.f32 %v338, %v422
    %v439 = vadd.f32 %v339, %v423
    %v440 = vadd.f32 %v340, %v424
    %v441 = vadd.f32 %v341, %v425
    %v442 = vadd.f32 %v342, %v426
    %v443 = vadd.f32 %v343, %v427
    %v444 = vadd.f32 %v344, %v428
    %v445 = vadd.f32 %v345, %v429
    %v446 = vadd.f32 %v346, %v430
    %v447 = vadd.f32 %v347, %v431
    %v448 = vadd.f32 %v348, %v432
    %449 = vset.pattern.permute.xlu0 4
    %450 = vperm.xlu0 %449, %v33
    %v451 = vpop.permute.xlu0 %450
    %453 = vset.pattern.permute.xlu0 4
    %454 = vperm.xlu0 %453, %v34
    %v455 = vpop.permute.xlu0 %454
    %457 = vset.pattern.permute.xlu0 4
    %458 = vperm.xlu0 %457, %v35
    %v459 = vpop.permute.xlu0 %458
    %461 = vset.pattern.permute.xlu0 4
    %462 = vperm.xlu0 %461, %v36
    %v463 = vpop.permute.xlu0 %462
    %465 = vset.pattern.permute.xlu0 4
    %466 = vperm.xlu0 %465, %v37
    %v467 = vpop.permute.xlu0 %466
    %469 = vset.pattern.permute.xlu0 4
    %470 = vperm.xlu0 %469, %v38
    %v471 = vpop.permute.xlu0 %470
    %473 = vset.pattern.permute.xlu0 4
    %474 = vperm.xlu0 %473, %v39
    %v475 = vpop.permute.xlu0 %474
    %477 = vset.pattern.permute.xlu0 4
    %478 = vperm.xlu0 %477, %v40
    %v479 = vpop.permute.xlu0 %478
    %481 = vset.pattern.permute.xlu0 4
    %482 = vperm.xlu0 %481, %v41
    %v483 = vpop.permute.xlu0 %482
    %485 = vset.pattern.permute.xlu0 4
    %486 = vperm.xlu0 %485, %v42
    %v487 = vpop.permute.xlu0 %486
    %489 = vset.pattern.permute.xlu0 4
    %490 = vperm.xlu0 %489, %v43
    %v491 = vpop.permute.xlu0 %490
    %493 = vset.pattern.permute.xlu0 4
    %494 = vperm.xlu0 %493, %v44
    %v495 = vpop.permute.xlu0 %494
    %497 = vset.pattern.permute.xlu0 4
    %498 = vperm.xlu0 %497, %v45
    %v499 = vpop.permute.xlu0 %498
    %501 = vset.pattern.permute.xlu0 4
    %502 = vperm.xlu0 %501, %v46
    %v503 = vpop.permute.xlu0 %502
    %505 = vset.pattern.permute.xlu0 4
    %506 = vperm.xlu0 %505, %v47
    %v507 = vpop.permute.xlu0 %506
    %509 = vset.pattern.permute.xlu0 4
    %510 = vperm.xlu0 %509, %v48
    %v511 = vpop.permute.xlu0 %510
    %v513 = vadd.f32 %v433, %v451
    %v514 = vadd.f32 %v434, %v455
    %v515 = vadd.f32 %v435, %v459
    %v516 = vadd.f32 %v436, %v463
    %v517 = vadd.f32 %v437, %v467
    %v518 = vadd.f32 %v438, %v471
    %v519 = vadd.f32 %v439, %v475
    %v520 = vadd.f32 %v440, %v479
    %v521 = vadd.f32 %v441, %v483
    %v522 = vadd.f32 %v442, %v487
    %v523 = vadd.f32 %v443, %v491
    %v524 = vadd.f32 %v444, %v495
    %v525 = vadd.f32 %v445, %v499
    %v526 = vadd.f32 %v446, %v503
    %v527 = vadd.f32 %v447, %v507
    %v528 = vadd.f32 %v448, %v511
    %v529 = vmax.f32 %v513, 0.0
    %v530 = vmax.f32 %v514, 0.0
    %v531 = vmax.f32 %v515, 0.0
    %v532 = vmax.f32 %v516, 0.0
    %v533 = vmax.f32 %v517, 0.0
    %v534 = vmax.f32 %v518, 0.0
    %v535 = vmax.f32 %v519, 0.0
    %v536 = vmax.f32 %v520, 0.0
    %v537 = vmax.f32 %v521, 0.0
    %v538 = vmax.f32 %v522, 0.0
    %v539 = vmax.f32 %v523, 0.0
    %v540 = vmax.f32 %v524, 0.0
    %v541 = vmax.f32 %v525, 0.0
    %v542 = vmax.f32 %v526, 0.0
    %v543 = vmax.f32 %v527, 0.0
    %v544 = vmax.f32 %v528, 0.0
    %v545 = vld [vmem:[%s2] sm:$0xff]
    %v546 = vld [vmem:[%s2 + $0x8] sm:$0xff]
    %v547 = vld [vmem:[%s2 + $0x10] sm:$0xff]
    %v548 = vld [vmem:[%s2 + $0x18] sm:$0xff]
    %v549 = vld [vmem:[%s2 + $0x20] sm:$0xff]
    %v550 = vld [vmem:[%s2 + $0x28] sm:$0xff]
    %v551 = vld [vmem:[%s2 + $0x30] sm:$0xff]
    %v552 = vld [vmem:[%s2 + $0x38] sm:$0xff]
    %v553 = vld [vmem:[%s2 + $0x40] sm:$0xff]
    %v554 = vld [vmem:[%s2 + $0x48] sm:$0xff]
    %v555 = vld [vmem:[%s2 + $0x50] sm:$0xff]
    %v556 = vld [vmem:[%s2 + $0x58] sm:$0xff]
    %v557 = vld [vmem:[%s2 + $0x60] sm:$0xff]
    %v558 = vld [vmem:[%s2 + $0x68] sm:$0xff]
    %v559 = vld [vmem:[%s2 + $0x70] sm:$0xff]
    %v560 = vld [vmem:[%s2 + $0x78] sm:$0xff]
    %561 = vset.pattern.permute.xlu0 5
    %562 = vperm.xlu0 %561, %v33
    %v563 = vpop.permute.xlu0 %562
    %565 = vset.pattern.permute.xlu0 5
    %566 = vperm.xlu0 %565, %v34
    %v567 = vpop.permute.xlu0 %566
    %569 = vset.pattern.permute.xlu0 5
    %570 = vperm.xlu0 %569, %v35
    %v571 = vpop.permute.xlu0 %570
    %573 = vset.pattern.permute.xlu0 5
    %574 = vperm.xlu0 %573, %v36
    %v575 = vpop.permute.xlu0 %574
    %577 = vset.pattern.permute.xlu0 5
    %578 = vperm.xlu0 %577, %v37
    %v579 = vpop.permute.xlu0 %578
    %581 = vset.pattern.permute.xlu0 5
    %582 = vperm.xlu0 %581, %v38
    %v583 = vpop.permute.xlu0 %582
    %585 = vset.pattern.permute.xlu0 5
    %586 = vperm.xlu0 %585, %v39
    %v587 = vpop.permute.xlu0 %586
    %589 = vset.pattern.permute.xlu0 5
    %590 = vperm.xlu0 %589, %v40
    %v591 = vpop.permute.xlu0 %590
    %593 = vset.pattern.permute.xlu0 5
    %594 = vperm.xlu0 %593, %v41
    %v595 = vpop.permute.xlu0 %594
    %597 = vset.pattern.permute.xlu0 5
    %598 = vperm.xlu0 %597, %v42
    %v599 = vpop.permute.xlu0 %598
    %601 = vset.pattern.permute.xlu0 5
    %602 = vperm.xlu0 %601, %v43
    %v603 = vpop.permute.xlu0 %602
    %605 = vset.pattern.permute.xlu0 5
    %606 = vperm.xlu0 %605, %v44
    %v607 = vpop.permute.xlu0 %606
    %609 = vset.pattern.permute.xlu0 5
    %610 = vperm.xlu0 %609, %v45
    %v611 = vpop.permute.xlu0 %610
    %613 = vset.pattern.permute.xlu0 5
    %614 = vperm.xlu0 %613, %v46
    %v615 = vpop.permute.xlu0 %614
    %617 = vset.pattern.permute.xlu0 5
    %618 = vperm.xlu0 %617, %v47
    %v619 = vpop.permute.xlu0 %618
    %621 = vset.pattern.permute.xlu0 5
    %622 = vperm.xlu0 %621, %v48
    %v623 = vpop.permute.xlu0 %622
    %625 = vmatprep.subr.mxu0 0.0
    %626 = vmatpush1.msra.mxu0 %v529
    %627 = vmatprep.subr.mxu0 0.0
    %628 = vmatpush1.msra.mxu0 %v530
    %629 = vmatprep.subr.mxu0 0.0
    %630 = vmatpush1.msra.mxu0 %v531
    %631 = vmatprep.subr.mxu0 0.0
    %632 = vmatpush1.msra.mxu0 %v532
    %633 = vmatprep.subr.mxu0 0.0
    %634 = vmatpush1.msra.mxu0 %v533
    %635 = vmatprep.subr.mxu0 0.0
    %636 = vmatpush1.msra.mxu0 %v534
    %637 = vmatprep.subr.mxu0 0.0
    %638 = vmatpush1.msra.mxu0 %v535
    %639 = vmatprep.subr.mxu0 0.0
    %640 = vmatpush1.msra.mxu0 %v536
    %641 = vmatprep.subr.mxu0 0.0
    %642 = vmatpush1.msra.mxu0 %v537
    %643 = vmatprep.subr.mxu0 0.0
    %644 = vmatpush1.msra.mxu0 %v538
    %645 = vmatprep.subr.mxu0 0.0
    %646 = vmatpush1.msra.mxu0 %v539
    %647 = vmatprep.subr.mxu0 0.0
    %648 = vmatpush1.msra.mxu0 %v540
    %649 = vmatprep.subr.mxu0 0.0
    %650 = vmatpush1.msra.mxu0 %v541
    %651 = vmatprep.subr.mxu0 0.0
    %652 = vmatpush1.msra.mxu0 %v542
    %653 = vmatprep.subr.mxu0 0.0
    %654 = vmatpush1.msra.mxu0 %v543
    %655 = vmatprep.subr.mxu0 0.0
    %656 = vmatpush1.msra.mxu0 %v544
    %657 = vmatprep.subr.mxu0 0.0
    %658 = vmatpush1.msra.mxu0 0.0
    %659 = vmatprep.subr.mxu0 0.0
    %660 = vmatpush1.msra.mxu0 0.0
    %661 = vmatprep.subr.mxu0 0.0
    %662 = vmatpush1.msra.mxu0 0.0
    %663 = vmatprep.subr.mxu0 0.0
    %664 = vmatpush1.msra.mxu0 0.0
    %665 = vmatprep.subr.mxu0 0.0
    %666 = vmatpush1.msra.mxu0 0.0
    %667 = vmatprep.subr.mxu0 0.0
    %668 = vmatpush1.msra.mxu0 0.0
    %669 = vmatprep.subr.mxu0 0.0
    %670 = vmatpush1.msra.mxu0 0.0
    %671 = vmatprep.subr.mxu0 0.0
    %672 = vmatpush1.msra.mxu0 0.0
    %673 = vmatprep.subr.mxu0 0.0
    %674 = vmatpush1.msra.mxu0 0.0
    %675 = vmatprep.subr.mxu0 0.0
    %676 = vmatpush1.msra.mxu0 0.0
    %677 = vmatprep.subr.mxu0 0.0
    %678 = vmatpush1.msra.mxu0 0.0
    %679 = vmatprep.subr.mxu0 0.0
    %680 = vmatpush1.msra.mxu0 0.0
    %681 = vmatprep.subr.mxu0 0.0
    %682 = vmatpush1.msra.mxu0 0.0
    %683 = vmatprep.subr.mxu0 0.0
    %684 = vmatpush1.msra.mxu0 0.0
    %685 = vmatprep.subr.mxu0 0.0
    %686 = vmatpush1.msra.mxu0 0.0
    %687 = vmatprep.subr.mxu0 0.0
    %688 = vmatpush1.msra.mxu0 0.0
    %689 = vmatprep.mubr.f32.mxu0 0.0
    %690 = vmatmul.mubr.f32.gmra.mrb[0].mxu0 %v545
    %v691 = vpop.f32.mrb[0].mxu0
    %v692 = vadd.f32 %v563, %v691
    %v693 = vpop.f32.mrb[0].mxu0
    %694 = vmatprep.mubr.f32.mxu0 0.0
    %695 = vmatmul.mubr.f32.gmra.mrb[0].mxu0 %v546
    %v696 = vpop.f32.mrb[0].mxu0
    %v697 = vadd.f32 %v567, %v696
    %v698 = vpop.f32.mrb[0].mxu0
    %699 = vmatprep.mubr.f32.mxu0 0.0
    %700 = vmatmul.mubr.f32.gmra.mrb[0].mxu0 %v547
    %v701 = vpop.f32.mrb[0].mxu0
    %v702 = vadd.f32 %v571, %v701
    %v703 = vpop.f32.mrb[0].mxu0
    %704 = vmatprep.mubr.f32.mxu0 0.0
    %705 = vmatmul.mubr.f32.gmra.mrb[0].mxu0 %v548
    %v706 = vpop.f32.mrb[0].mxu0
    %v707 = vadd.f32 %v575, %v706
    %v708 = vpop.f32.mrb[0].mxu0
    %709 = vmatprep.mubr.f32.mxu0 0.0
    %710 = vmatmul.mubr.f32.gmra.mrb[0].mxu0 %v549
    %v711 = vpop.f32.mrb[0].mxu0
    %v712 = vadd.f32 %v579, %v711
    %v713 = vpop.f32.mrb[0].mxu0
    %714 = vmatprep.mubr.f32.mxu0 0.0
    %715 = vmatmul.mubr.f32.gmra.mrb[0].mxu0 %v550
    %v716 = vpop.f32.mrb[0].mxu0
    %v717 = vadd.f32 %v583, %v716
    %v718 = vpop.f32.mrb[0].mxu0
    %719 = vmatprep.mubr.f32.mxu0 0.0
    %720 = vmatmul.mubr.f32.gmra.mrb[0].mxu0 %v551
    %v721 = vpop.f32.mrb[0].mxu0
    %v722 = vadd.f32 %v587, %v721
    %v723 = vpop.f32.mrb[0].mxu0
    %724 = vmatprep.mubr.f32.mxu0 0.0
    %725 = vmatmul.mubr.f32.gmra.mrb[0].mxu0 %v552
    %v726 = vpop.f32.mrb[0].mxu0
    %v727 = vadd.f32 %v591, %v726
    %v728 = vpop.f32.mrb[0].mxu0
    %729 = vmatprep.mubr.f32.mxu0 0.0
    %730 = vmatmul.mubr.f32.gmra.mrb[0].mxu0 %v553
    %v731 = vpop.f32.mrb[0].mxu0
    %v732 = vadd.f32 %v595, %v731
    %v733 = vpop.f32.mrb[0].mxu0
    %734 = vmatprep.mubr.f32.mxu0 0.0
    %735 = vmatmul.mubr.f32.gmra.mrb[0].mxu0 %v554
    %v736 = vpop.f32.mrb[0].mxu0
    %v737 = vadd.f32 %v599, %v736
    %v738 = vpop.f32.mrb[0].mxu0
    %739 = vmatprep.mubr.f32.mxu0 0.0
    %740 = vmatmul.mubr.f32.gmra.mrb[0].mxu0 %v555
    %v741 = vpop.f32.mrb[0].mxu0
    %v742 = vadd.f32 %v603, %v741
    %v743 = vpop.f32.mrb[0].mxu0
    %744 = vmatprep.mubr.f32.mxu0 0.0
    %745 = vmatmul.mubr.f32.gmra.mrb[0].mxu0 %v556
    %v746 = vpop.f32.mrb[0].mxu0
    %v747 = vadd.f32 %v607, %v746
    %v748 = vpop.f32.mrb[0].mxu0
    %749 = vmatprep.mubr.f32.mxu0 0.0
    %750 = vmatmul.mubr.f32.gmra.mrb[0].mxu0 %v557
    %v751 = vpop.f32.mrb[0].mxu0
    %v752 = vadd.f32 %v611, %v751
    %v753 = vpop.f32.mrb[0].mxu0
    %754 = vmatprep.mubr.f32.mxu0 0.0
    %755 = vmatmul.mubr.f32.gmra.mrb[0].mxu0 %v558
    %v756 = vpop.f32.mrb[0].mxu0
    %v757 = vadd.f32 %v615, %v756
    %v758 = vpop.f32.mrb[0].mxu0
    %759 = vmatprep.mubr.f32.mxu0 0.0
    %760 = vmatmul.mubr.f32.gmra.mrb[0].mxu0 %v559
    %v761 = vpop.f32.mrb[0].mxu0
    %v762 = vadd.f32 %v619, %v761
    %v763 = vpop.f32.mrb[0].mxu0
    %764 = vmatprep.mubr.f32.mxu0 0.0
    %765 = vmatmul.mubr.f32.gmra.mrb[0].mxu0 %v560
    %v766 = vpop.f32.mrb[0].mxu0
    %v767 = vadd.f32 %v623, %v766
    %v768 = vpop.f32.mrb[0].mxu0
    %769 = vdwg.mxu0
    %v770 = vmax.f32 %v692, 0.0
    %v771 = vmax.f32 %v697, 0.0
    %v772 = vmax.f32 %v702, 0.0
    %v773 = vmax.f32 %v707, 0.0
    %v774 = vmax.f32 %v712, 0.0
    %v775 = vmax.f32 %v717, 0.0
    %v776 = vmax.f32 %v722, 0.0
    %v777 = vmax.f32 %v727, 0.0
    %v778 = vmax.f32 %v732, 0.0
    %v779 = vmax.f32 %v737, 0.0
    %v780 = vmax.f32 %v742, 0.0
    %v781 = vmax.f32 %v747, 0.0
    %v782 = vmax.f32 %v752, 0.0
    %v783 = vmax.f32 %v757, 0.0
    %v784 = vmax.f32 %v762, 0.0
    %v785 = vmax.f32 %v767, 0.0
    %v786 = vld [vmem:[#allocation2] sm:$0xff]
    %v787 = vld [vmem:[#allocation2 + $0x8] sm:$0xff]
    %v788 = vld [vmem:[#allocation2 + $0x10] sm:$0xff]
    %v789 = vld [vmem:[#allocation2 + $0x18] sm:$0xff]
    %v790 = vld [vmem:[#allocation2 + $0x20] sm:$0xff]
    %v791 = vld [vmem:[#allocation2 + $0x28] sm:$0xff]
    %v792 = vld [vmem:[#allocation2 + $0x30] sm:$0xff]
    %v793 = vld [vmem:[#allocation2 + $0x38] sm:$0xff]
    %v794 = vld [vmem:[#allocation2 + $0x40] sm:$0xff]
    %v795 = vld [vmem:[#allocation2 + $0x48] sm:$0xff]
    %v796 = vld [vmem:[#allocation2 + $0x50] sm:$0xff]
    %v797 = vld [vmem:[#allocation2 + $0x58] sm:$0xff]
    %v798 = vld [vmem:[#allocation2 + $0x60] sm:$0xff]
    %v799 = vld [vmem:[#allocation2 + $0x68] sm:$0xff]
    %v800 = vld [vmem:[#allocation2 + $0x70] sm:$0xff]
    %v801 = vld [vmem:[#allocation2 + $0x78] sm:$0xff]
    %802 = vset.pattern.permute.xlu0 6
    %803 = vperm.xlu0 %802, %v33
    %v804 = vpop.permute.xlu0 %803
    %806 = vset.pattern.permute.xlu0 6
    %807 = vperm.xlu0 %806, %v34
    %v808 = vpop.permute.xlu0 %807
    %810 = vset.pattern.permute.xlu0 6
    %811 = vperm.xlu0 %810, %v35
    %v812 = vpop.permute.xlu0 %811
    %814 = vset.pattern.permute.xlu0 6
    %815 = vperm.xlu0 %814, %v36
    %v816 = vpop.permute.xlu0 %815
    %818 = vset.pattern.permute.xlu0 6
    %819 = vperm.xlu0 %818, %v37
    %v820 = vpop.permute.xlu0 %819
    %822 = vset.pattern.permute.xlu0 6
    %823 = vperm.xlu0 %822, %v38
    %v824 = vpop.permute.xlu0 %823
    %826 = vset.pattern.permute.xlu0 6
    %827 = vperm.xlu0 %826, %v39
    %v828 = vpop.permute.xlu0 %827
    %830 = vset.pattern.permute.xlu0 6
    %831 = vperm.xlu0 %830, %v40
    %v832 = vpop.permute.xlu0 %831
    %834 = vset.pattern.permute.xlu0 6
    %835 = vperm.xlu0 %834, %v41
    %v836 = vpop.permute.xlu0 %835
    %838 = vset.pattern.permute.xlu0 6
    %839 = vperm.xlu0 %838, %v42
    %v840 = vpop.permute.xlu0 %839
    %842 = vset.pattern.permute.xlu0 6
    %843 = vperm.xlu0 %842, %v43
    %v844 = vpop.permute.xlu0 %843
    %846 = vset.pattern.permute.xlu0 6
    %847 = vperm.xlu0 %846, %v44
    %v848 = vpop.permute.xlu0 %847
    %850 = vset.pattern.permute.xlu0 6
    %851 = vperm.xlu0 %850, %v45
    %v852 = vpop.permute.xlu0 %851
    %854 = vset.pattern.permute.xlu0 6
    %855 = vperm.xlu0 %854, %v46
    %v856 = vpop.permute.xlu0 %855
    %858 = vset.pattern.permute.xlu0 6
    %859 = vperm.xlu0 %858, %v47
    %v860 = vpop.permute.xlu0 %859
    %862 = vset.pattern.permute.xlu0 6
    %863 = vperm.xlu0 %862, %v48
    %v864 = vpop.permute.xlu0 %863
    %866 = vmatprep.subr.mxu0 0.0
    %867 = vmatpush1.msra.mxu0 %v770
    %868 = vmatprep.subr.mxu0 0.0
    %869 = vmatpush1.msra.mxu0 %v771
    %870 = vmatprep.subr.mxu0 0.0
    %871 = vmatpush1.msra.mxu0 %v772
    %872 = vmatprep.subr.mxu0 0.0
    %873 = vmatpush1.msra.mxu0 %v773
    %874 = vmatprep.subr.mxu0 0.0
    %875 = vmatpush1.msra.mxu0 %v774
    %876 = vmatprep.subr.mxu0 0.0
    %877 = vmatpush1.msra.mxu0 %v775
    %878 = vmatprep.subr.mxu0 0.0
    %879 = vmatpush1.msra.mxu0 %v776
    %880 = vmatprep.subr.mxu0 0.0
    %881 = vmatpush1.msra.mxu0 %v777
    %882 = vmatprep.subr.mxu0 0.0
    %883 = vmatpush1.msra.mxu0 %v778
    %884 = vmatprep.subr.mxu0 0.0
    %885 = vmatpush1.msra.mxu0 %v779
    %886 = vmatprep.subr.mxu0 0.0
    %887 = vmatpush1.msra.mxu0 %v780
    %888 = vmatprep.subr.mxu0 0.0
    %889 = vmatpush1.msra.mxu0 %v781
    %890 = vmatprep.subr.mxu0 0.0
    %891 = vmatpush1.msra.mxu0 %v782
    %892 = vmatprep.subr.mxu0 0.0
    %893 = vmatpush1.msra.mxu0 %v783
    %894 = vmatprep.subr.mxu0 0.0
    %895 = vmatpush1.msra.mxu0 %v784
    %896 = vmatprep.subr.mxu0 0.0
    %897 = vmatpush1.msra.mxu0 %v785
    %898 = vmatprep.subr.mxu0 0.0
    %899 = vmatpush1.msra.mxu0 0.0
    %900 = vmatprep.subr.mxu0 0.0
    %901 = vmatpush1.msra.mxu0 0.0
    %902 = vmatprep.subr.mxu0 0.0
    %903 = vmatpush1.msra.mxu0 0.0
    %904 = vmatprep.subr.mxu0 0.0
    %905 = vmatpush1.msra.mxu0 0.0
    %906 = vmatprep.subr.mxu0 0.0
    %907 = vmatpush1.msra.mxu0 0.0
    %908 = vmatprep.subr.mxu0 0.0
    %909 = vmatpush1.msra.mxu0 0.0
    %910 = vmatprep.subr.mxu0 0.0
    %911 = vmatpush1.msra.mxu0 0.0
    %912 = vmatprep.subr.mxu0 0.0
    %913 = vmatpush1.msra.mxu0 0.0
    %914 = vmatprep.subr.mxu0 0.0
    %915 = vmatpush1.msra.mxu0 0.0
    %916 = vmatprep.subr.mxu0 0.0
    %917 = vmatpush1.msra.mxu0 0.0
    %918 = vmatprep.subr.mxu0 0.0
    %919 = vmatpush1.msra.mxu0 0.0
    %920 = vmatprep.subr.mxu0 0.0
    %921 = vmatpush1.msra.mxu0 0.0
    %922 = vmatprep.subr.mxu0 0.0
    %923 = vmatpush1.msra.mxu0 0.0
    %924 = vmatprep.subr.mxu0 0.0
    %925 = vmatpush1.msra.mxu0 0.0
    %926 = vmatprep.subr.mxu0 0.0
    %927 = vmatpush1.msra.mxu0 0.0
    %928 = vmatprep.subr.mxu0 0.0
    %929 = vmatpush1.msra.mxu0 0.0
    %930 = vmatprep.mubr.f32.mxu0 0.0
    %931 = vmatmul.mubr.f32.gmra.mrb[0].mxu0 %v786
    %v932 = vpop.f32.mrb[0].mxu0
    %v933 = vadd.f32 %v804, %v932
    %v934 = vpop.f32.mrb[0].mxu0
    %935 = vmatprep.mubr.f32.mxu0 0.0
    %936 = vmatmul.mubr.f32.gmra.mrb[0].mxu0 %v787
    %v937 = vpop.f32.mrb[0].mxu0
    %v938 = vadd.f32 %v808, %v937
    %v939 = vpop.f32.mrb[0].mxu0
    %940 = vmatprep.mubr.f32.mxu0 0.0
    %941 = vmatmul.mubr.f32.gmra.mrb[0].mxu0 %v788
    %v942 = vpop.f32.mrb[0].mxu0
    %v943 = vadd.f32 %v812, %v942
    %v944 = vpop.f32.mrb[0].mxu0
    %945 = vmatprep.mubr.f32.mxu0 0.0
    %946 = vmatmul.mubr.f32.gmra.mrb[0].mxu0 %v789
    %v947 = vpop.f32.mrb[0].mxu0
    %v948 = vadd.f32 %v816, %v947
    %v949 = vpop.f32.mrb[0].mxu0
    %950 = vmatprep.mubr.f32.mxu0 0.0
    %951 = vmatmul.mubr.f32.gmra.mrb[0].mxu0 %v790
    %v952 = vpop.f32.mrb[0].mxu0
    %v953 = vadd.f32 %v820, %v952
    %v954 = vpop.f32.mrb[0].mxu0
    %955 = vmatprep.mubr.f32.mxu0 0.0
    %956 = vmatmul.mubr.f32.gmra.mrb[0].mxu0 %v791
    %v957 = vpop.f32.mrb[0].mxu0
    %v958 = vadd.f32 %v824, %v957
    %v959 = vpop.f32.mrb[0].mxu0
    %960 = vmatprep.mubr.f32.mxu0 0.0
    %961 = vmatmul.mubr.f32.gmra.mrb[0].mxu0 %v792
    %v962 = vpop.f32.mrb[0].mxu0
    %v963 = vadd.f32 %v828, %v962
    %v964 = vpop.f32.mrb[0].mxu0
    %965 = vmatprep.mubr.f32.mxu0 0.0
    %966 = vmatmul.mubr.f32.gmra.mrb[0].mxu0 %v793
    %v967 = vpop.f32.mrb[0].mxu0
    %v968 = vadd.f32 %v832, %v967
    %v969 = vpop.f32.mrb[0].mxu0
    %970 = vmatprep.mubr.f32.mxu0 0.0
    %971 = vmatmul.mubr.f32.gmra.mrb[0].mxu0 %v794
    %v972 = vpop.f32.mrb[0].mxu0
    %v973 = vadd.f32 %v836, %v972
    %v974 = vpop.f32.mrb[0].mxu0
    %975 = vmatprep.mubr.f32.mxu0 0.0
    %976 = vmatmul.mubr.f32.gmra.mrb[0].mxu0 %v795
    %v977 = vpop.f32.mrb[0].mxu0
    %v978 = vadd.f32 %v840, %v977
    %v979 = vpop.f32.mrb[0].mxu0
    %980 = vmatprep.mubr.f32.mxu0 0.0
    %981 = vmatmul.mubr.f32.gmra.mrb[0].mxu0 %v796
    %v982 = vpop.f32.mrb[0].mxu0
    %v983 = vadd.f32 %v844, %v982
    %v984 = vpop.f32.mrb[0].mxu0
    %985 = vmatprep.mubr.f32.mxu0 0.0
    %986 = vmatmul.mubr.f32.gmra.mrb[0].mxu0 %v797
    %v987 = vpop.f32.mrb[0].mxu0
    %v988 = vadd.f32 %v848, %v987
    %v989 = vpop.f32.mrb[0].mxu0
    %990 = vmatprep.mubr.f32.mxu0 0.0
    %991 = vmatmul.mubr.f32.gmra.mrb[0].mxu0 %v798
    %v992 = vpop.f32.mrb[0].mxu0
    %v993 = vadd.f32 %v852, %v992
    %v994 = vpop.f32.mrb[0].mxu0
    %995 = vmatprep.mubr.f32.mxu0 0.0
    %996 = vmatmul.mubr.f32.gmra.mrb[0].mxu0 %v799
    %v997 = vpop.f32.mrb[0].mxu0
    %v998 = vadd.f32 %v856, %v997
    %v999 = vpop.f32.mrb[0].mxu0
    %1000 = vmatprep.mubr.f32.mxu0 0.0
    %1001 = vmatmul.mubr.f32.gmra.mrb[0].mxu0 %v800
    %v1002 = vpop.f32.mrb[0].mxu0
    %v1003 = vadd.f32 %v860, %v1002
    %v1004 = vpop.f32.mrb[0].mxu0
    %1005 = vmatprep.mubr.f32.mxu0 0.0
    %1006 = vmatmul.mubr.f32.gmra.mrb[0].mxu0 %v801
    %v1007 = vpop.f32.mrb[0].mxu0
    %v1008 = vadd.f32 %v864, %v1007
    %v1009 = vpop.f32.mrb[0].mxu0
    %1010 = vdwg.mxu0
    %v1011 = vmax.f32 %v933, 0.0
    %v1012 = vmax.f32 %v938, 0.0
    %v1013 = vmax.f32 %v943, 0.0
    %v1014 = vmax.f32 %v948, 0.0
    %v1015 = vmax.f32 %v953, 0.0
    %v1016 = vmax.f32 %v958, 0.0
    %v1017 = vmax.f32 %v963, 0.0
    %v1018 = vmax.f32 %v968, 0.0
    %v1019 = vmax.f32 %v973, 0.0
    %v1020 = vmax.f32 %v978, 0.0
    %v1021 = vmax.f32 %v983, 0.0
    %v1022 = vmax.f32 %v988, 0.0
    %v1023 = vmax.f32 %v993, 0.0
    %v1024 = vmax.f32 %v998, 0.0
    %v1025 = vmax.f32 %v1003, 0.0
    %v1026 = vmax.f32 %v1008, 0.0
    %1027 = vset.pattern.permute.xlu0 7
    %1028 = vperm.xlu0 %1027, %v33
    %v1029 = vpop.permute.xlu0 %1028
    %1031 = vset.pattern.permute.xlu0 7
    %1032 = vperm.xlu0 %1031, %v34
    %v1033 = vpop.permute.xlu0 %1032
    %1035 = vset.pattern.permute.xlu0 7
    %1036 = vperm.xlu0 %1035, %v35
    %v1037 = vpop.permute.xlu0 %1036
    %1039 = vset.pattern.permute.xlu0 7
    %1040 = vperm.xlu0 %1039, %v36
    %v1041 = vpop.permute.xlu0 %1040
    %1043 = vset.pattern.permute.xlu0 7
    %1044 = vperm.xlu0 %1043, %v37
    %v1045 = vpop.permute.xlu0 %1044
    %1047 = vset.pattern.permute.xlu0 7
    %1048 = vperm.xlu0 %1047, %v38
    %v1049 = vpop.permute.xlu0 %1048
    %1051 = vset.pattern.permute.xlu0 7
    %1052 = vperm.xlu0 %1051, %v39
    %v1053 = vpop.permute.xlu0 %1052
    %1055 = vset.pattern.permute.xlu0 7
    %1056 = vperm.xlu0 %1055, %v40
    %v1057 = vpop.permute.xlu0 %1056
    %1059 = vset.pattern.permute.xlu0 7
    %1060 = vperm.xlu0 %1059, %v41
    %v1061 = vpop.permute.xlu0 %1060
    %1063 = vset.pattern.permute.xlu0 7
    %1064 = vperm.xlu0 %1063, %v42
    %v1065 = vpop.permute.xlu0 %1064
    %1067 = vset.pattern.permute.xlu0 7
    %1068 = vperm.xlu0 %1067, %v43
    %v1069 = vpop.permute.xlu0 %1068
    %1071 = vset.pattern.permute.xlu0 7
    %1072 = vperm.xlu0 %1071, %v44
    %v1073 = vpop.permute.xlu0 %1072
    %1075 = vset.pattern.permute.xlu0 7
    %1076 = vperm.xlu0 %1075, %v45
    %v1077 = vpop.permute.xlu0 %1076
    %1079 = vset.pattern.permute.xlu0 7
    %1080 = vperm.xlu0 %1079, %v46
    %v1081 = vpop.permute.xlu0 %1080
    %1083 = vset.pattern.permute.xlu0 7
    %1084 = vperm.xlu0 %1083, %v47
    %v1085 = vpop.permute.xlu0 %1084
    %1087 = vset.pattern.permute.xlu0 7
    %1088 = vperm.xlu0 %1087, %v48
    %v1089 = vpop.permute.xlu0 %1088
    %v1091 = vmul.f32 %v1011, %v1029
    %v1092 = vmul.f32 %v1012, %v1033
    %v1093 = vmul.f32 %v1013, %v1037
    %v1094 = vmul.f32 %v1014, %v1041
    %v1095 = vmul.f32 %v1015, %v1045
    %v1096 = vmul.f32 %v1016, %v1049
    %v1097 = vmul.f32 %v1017, %v1053
    %v1098 = vmul.f32 %v1018, %v1057
    %v1099 = vmul.f32 %v1019, %v1061
    %v1100 = vmul.f32 %v1020, %v1065
    %v1101 = vmul.f32 %v1021, %v1069
    %v1102 = vmul.f32 %v1022, %v1073
    %v1103 = vmul.f32 %v1023, %v1077
    %v1104 = vmul.f32 %v1024, %v1081
    %v1105 = vmul.f32 %v1025, %v1085
    %v1106 = vmul.f32 %v1026, %v1089
    %v1107 = vadd.f32 %v1091, %v1092
    %v1108 = vadd.f32 %v1107, %v1093
    %v1109 = vadd.f32 %v1108, %v1094
    %v1110 = vadd.f32 %v1109, %v1095
    %v1111 = vadd.f32 %v1110, %v1096
    %v1112 = vadd.f32 %v1111, %v1097
    %v1113 = vadd.f32 %v1112, %v1098
    %v1114 = vadd.f32 %v1113, %v1099
    %v1115 = vadd.f32 %v1114, %v1100
    %v1116 = vadd.f32 %v1115, %v1101
    %v1117 = vadd.f32 %v1116, %v1102
    %v1118 = vadd.f32 %v1117, %v1103
    %v1119 = vadd.f32 %v1118, %v1104
    %v1120 = vadd.f32 %v1119, %v1105
    %v1121 = vadd.f32 %v1120, %v1106
    %v1122 = vrot.slane %v1121, 4
    %v1123 = vadd.f32 %v1121, %v1122
    %v1124 = vrot.slane %v1123, 2
    %v1125 = vadd.f32 %v1123, %v1124
    %v1126 = vrot.slane %v1125, 1
    %v1127 = vadd.f32 %v1125, %v1126
    %1128 = vst [vmem:[#allocation5] sm:$0x1] %v1127
    // Predicated region
    $region22: #{tpu_custom_call.1} parent=1 // pred_check
      _
    $region23: #{tpu_custom_call.1} parent=1 // pred_check_branch
      %1130 = sbr.rel (0) target = $region25
    $region24: #{tpu_custom_call.1} parent=1 // pred_region
      %s1132 = ssub.s32 16, 16
      %1133 = vsyncadd [#allocation4], %s1132
      %s1135 = sshll.u32 [#allocation5], 4
      %s1136 = int_to_ptr.vmem [resolvable:$true] %s1135
      %1138 = dma.vmem_to_hbm [thread:$0]  %s1136, 16, %s4, [#allocation4]
    $region25: #{tpu_custom_call.1} parent=1 // pred_fallthru
      _
    // Predicated region
    $region26: #{tpu_custom_call.1} parent=1 // pred_check
      _
    $region27: #{tpu_custom_call.1} parent=1 // pred_check_branch
      %1140 = sbr.rel (0) target = $region29
    $region28: #{tpu_custom_call.1} parent=1 // pred_region
      %1141 = dma.done [#allocation4], 16
    $region29: #{tpu_custom_call.1} parent=1 // pred_fallthru
      _
    %1142 = vsyncpa [#allocation3], 1
    %1143 = vsyncpa [#allocation4], 1

</llo_original>
